<compile_context>
chip_gen: v5e
topology: v5e:2x2
jax: 0.10.0
libtpu: 0.0.40
codegen_flags: <defaults>
</compile_context>

<pallas_src>
import jax
import jax.numpy as jnp
from jax import lax
from jax.experimental import pallas as pl
from jax.experimental.pallas import tpu as pltpu

_LANE = 128
_SUBLANE = 8


def _round_up(x, m):
    return (x + m - 1) // m * m


# ---------------------------------------------------------------------------
# Kernels
# ---------------------------------------------------------------------------
def _logreg_kernel_resident(x_ref, w_ref, b_ref, o_ref):
    # x_ref: (tm, Fp)   w_ref: (Cp, Fp)   b_ref: (1, Cp)   o_ref: (tm, Cp)
    # Whole weight is VMEM-resident; single matmul per batch tile, no scratch.
    acc = lax.dot_general(
        x_ref[...],
        w_ref[...],
        dimension_numbers=(((1,), (1,)), ((), ())),   # x . W^T, no transpose op
        preferred_element_type=jnp.float32,
    )
    o_ref[...] = (acc + b_ref[...]).astype(o_ref.dtype)


def _logreg_kernel_ksplit(x_ref, w_ref, b_ref, o_ref):
    # Blocked reduction over the feature axis (rare for LogReg-sized shapes).
    # The f32 output block is VMEM-resident across k (index_map ignores k),
    # so accumulate into it directly; bias is the k==0 init.
    @pl.when(pl.program_id(1) == 0)
    def _():
        o_ref[...] = jnp.broadcast_to(b_ref[...], o_ref.shape).astype(o_ref.dtype)

    o_ref[...] += lax.dot_general(
        x_ref[...],
        w_ref[...],
        dimension_numbers=(((1,), (1,)), ((), ())),
        preferred_element_type=jnp.float32,
    ).astype(o_ref.dtype)


# ---------------------------------------------------------------------------
# Wrapper
# ---------------------------------------------------------------------------
def make_logreg_forward(weight, bias, *,
                        compute_dtype=None,
                        vmem_budget_bytes=24 * 1024 * 1024,
                        vmem_limit_bytes=32 * 1024 * 1024):
    """Build a jitted forward for nn.Linear(ft_in, nb_classes) semantics.

    weight: (nb_classes, ft_in)  (PyTorch layout, kept as-is — no transpose)
    bias:   (nb_classes,)
    Returns f(x): x of shape (..., ft_in) -> (..., nb_classes), float32.
    Optionally set compute_dtype=jnp.bfloat16 to halve HBM bytes (f32 accum);
    re-validate with a looser tolerance if used.
    """
    C, F = weight.shape
    assert bias.shape == (C,)
    out_dtype = jnp.float32
    if compute_dtype is not None:
        weight = weight.astype(compute_dtype)
    in_itemsize = jnp.dtype(weight.dtype).itemsize

    Cp = _round_up(C, _LANE)          # lane-dense output / weight rows
    F128 = _round_up(F, _LANE)

    # ---- setup-time strategy choice (depends only on F and Cp) -------------
    w_resident_bytes = 2 * Cp * F128 * in_itemsize          # double-buffered W
    min_tail = 2 * _SUBLANE * (F128 * in_itemsize + Cp * 4) + 2 * Cp * 4
    resident = (w_resident_bytes + min_tail) <= vmem_budget_bytes

    if resident:
        Fp = F128
        tk = Fp                        # whole feature axis in one block
    else:
        tk = _LANE
        for cand in (8192, 4096, 2048, 1024, 512, 256, 128):
            need = (2 * (Cp + 256) * cand * in_itemsize
                    + 2 * 256 * Cp * 4 + 2 * Cp * 4)
            if need <= vmem_budget_bytes:
                tk = cand
                break
        Fp = _round_up(F, tk)

    # ---- pad the static parameters ONCE ------------------------------------
    w_p = weight
    if (Cp, Fp) != (C, F):
        w_p = jnp.pad(weight, ((0, Cp - C), (0, Fp - F)))
    b_p = bias.astype(out_dtype).reshape(1, C)
    if Cp != C:
        b_p = jnp.pad(b_p, ((0, 0), (0, Cp - C)))

    def _choose_tm(Bp, per_row_bytes, fixed_bytes):
        # Largest power-of-two batch tile that fits the VMEM budget, wastes
        # <= ~12.5% on pure zero padding, and (for large batches) leaves at
        # least two batch blocks so both v7x TensorCores are used.
        for tm in (1024, 512, 256, 128, 64, 32, 16, 8):
            if tm > Bp:
                continue
            if fixed_bytes + tm * per_row_bytes > vmem_budget_bytes:
                continue
            padded = _round_up(Bp, tm)
            if Bp >= 512 and padded // tm < 2:
                continue
            if padded - Bp > Bp // 8:
                continue
            return tm
        return _SUBLANE

    def forward(x):
        assert x.shape[-1] == F, f"expected last dim {F}, got {x.shape}"
        lead = x.shape[:-1]
        x2 = x.reshape((-1, F))
        if compute_dtype is not None:
            x2 = x2.astype(compute_dtype)
        B = x2.shape[0]
        Bp = _round_up(max(B, 1), _SUBLANE)

        cparams = pltpu.CompilerParams(
            dimension_semantics=("parallel",) if resident
            else ("parallel", "arbitrary"),
            vmem_limit_bytes=vmem_limit_bytes,
        )

        if resident:
            per_row = 2 * (Fp * in_itemsize + Cp * 4)        # x row + out row (dbl-buf)
            fixed = w_resident_bytes + 2 * Cp * 4            # W + bias
            tm = _choose_tm(Bp, per_row, fixed)
            Bt = _round_up(Bp, tm)
            x_p = x2
            if Bt != B or Fp != F:
                x_p = jnp.pad(x2, ((0, Bt - B), (0, Fp - F)))
            out_p = pl.pallas_call(
                _logreg_kernel_resident,
                out_shape=jax.ShapeDtypeStruct((Bt, Cp), out_dtype),
                grid_spec=pltpu.PrefetchScalarGridSpec(
                    num_scalar_prefetch=0,
                    grid=(Bt // tm,),
                    in_specs=[
                        pl.BlockSpec((tm, Fp), lambda i: (i, 0)),   # x (streamed once)
                        pl.BlockSpec((Cp, Fp), lambda i: (0, 0)),   # whole W, VMEM-resident
                        pl.BlockSpec((1, Cp), lambda i: (0, 0)),    # bias
                    ],
                    out_specs=pl.BlockSpec((tm, Cp), lambda i: (i, 0)),
                ),
                compiler_params=cparams,
                cost_estimate=pl.CostEstimate(
                    flops=2 * Bt * Fp * Cp,
                    transcendentals=0,
                    bytes_accessed=in_itemsize * (Bt * Fp + Cp * Fp) + 4 * Bt * Cp,
                ),
            )(x_p, w_p, b_p)
        else:
            per_row = 2 * tk * in_itemsize + 2 * Cp * 4
            fixed = 2 * Cp * tk * in_itemsize + 2 * Cp * 4
            tm = _choose_tm(Bp, per_row, fixed)
            Bt = _round_up(Bp, tm)
            x_p = x2
            if Bt != B or Fp != F:
                x_p = jnp.pad(x2, ((0, Bt - B), (0, Fp - F)))
            out_p = pl.pallas_call(
                _logreg_kernel_ksplit,
                out_shape=jax.ShapeDtypeStruct((Bt, Cp), out_dtype),
                grid_spec=pltpu.PrefetchScalarGridSpec(
                    num_scalar_prefetch=0,
                    grid=(Bt // tm, Fp // tk),                      # reduction last
                    in_specs=[
                        pl.BlockSpec((tm, tk), lambda i, k: (i, k)),   # x
                        pl.BlockSpec((Cp, tk), lambda i, k: (0, k)),   # W (C, F) layout
                        pl.BlockSpec((1, Cp), lambda i, k: (0, 0)),    # bias
                    ],
                    out_specs=pl.BlockSpec((tm, Cp), lambda i, k: (i, 0)),
                ),
                compiler_params=cparams,
                cost_estimate=pl.CostEstimate(
                    flops=2 * Bt * Fp * Cp,
                    transcendentals=0,
                    bytes_accessed=in_itemsize * (Bt * Fp + Cp * Fp) + 4 * Bt * Cp,
                ),
            )(x_p, w_p, b_p)

        out = out_p[:B, :C]
        return out.reshape(lead + (C,))

    return jax.jit(forward)


def xavier_uniform(key, out_features, in_features, dtype=jnp.float32):
    # Matches torch.nn.init.xavier_uniform_ (gain=1.0).
    limit = jnp.sqrt(6.0 / (in_features + out_features))
    return jax.random.uniform(
        key, (out_features, in_features), dtype=dtype, minval=-limit, maxval=limit
    )


if __name__ == "__main__":
    batch, ft_in, nb_classes = 8, 32, 16

    key = jax.random.PRNGKey(0)
    kx, kw = jax.random.split(key)

    x = jax.random.normal(kx, (batch, ft_in), dtype=jnp.float32)
    weight = xavier_uniform(kw, nb_classes, ft_in)          # (nb_classes, ft_in)
    bias = jnp.zeros((nb_classes,), dtype=jnp.float32)      # bias.data.fill_(0.0)

    logreg = make_logreg_forward(weight, bias)
    out = jax.block_until_ready(logreg(x))

    # Sanity check against plain JAX reference.
    ref = x @ weight.T + bias
    assert out.shape == (batch, nb_classes)
    assert jnp.allclose(out, ref, atol=1e-5, rtol=1e-5)

    print("KERNEL_OK")
</pallas_src>

<mosaic_0001>
module attributes {stable_mosaic.version = 11 : i64} {
  func.func @_logreg_kernel_resident(%arg0: i32, %arg1: memref<8x128xf32, #tpu.memory_space<vmem>>, %arg2: memref<128x128xf32, #tpu.memory_space<vmem>>, %arg3: memref<1x128xf32, #tpu.memory_space<vmem>>, %arg4: memref<8x128xf32, #tpu.memory_space<vmem>>) attributes {dimension_semantics = [#tpu.dimension_semantics<parallel>], iteration_bounds = array<i64: 1>, scalar_prefetch = 0 : i64, scratch_operands = 0 : i64, tpu.core_type = #tpu.core_type<tc>, window_params = [{transform_indices = @transform_0, window_bounds = array<i64: 8, 128>}, {pipeline_mode = #tpu.pipeline_mode<synchronous>, transform_indices = @transform_1, window_bounds = array<i64: 128, 128>}, {pipeline_mode = #tpu.pipeline_mode<synchronous>, transform_indices = @transform_2, window_bounds = array<i64: 1, 128>}, {transform_indices = @transform_3, window_bounds = array<i64: 8, 128>}]} {
    %c0 = arith.constant 0 : index
    %c0_0 = arith.constant 0 : index
    %0 = vector.load %arg1[%c0, %c0_0] : memref<8x128xf32, #tpu.memory_space<vmem>>, vector<8x128xf32>
    %c0_1 = arith.constant 0 : index
    %c0_2 = arith.constant 0 : index
    %1 = vector.load %arg2[%c0_1, %c0_2] : memref<128x128xf32, #tpu.memory_space<vmem>>, vector<128x128xf32>
    %cst = arith.constant dense<0.000000e+00> : vector<8x128xf32>
    %2 = tpu.matmul %0, %1, %cst {dimension_numbers = #tpu.dot_dimension_numbers<[1], [1], [0], [0], [0, 0, 1, 0], [], []>} : vector<8x128xf32>, vector<128x128xf32>, vector<8x128xf32> -> vector<8x128xf32>
    %c0_3 = arith.constant 0 : index
    %c0_4 = arith.constant 0 : index
    %3 = vector.load %arg3[%c0_3, %c0_4] : memref<1x128xf32, #tpu.memory_space<vmem>>, vector<1x128xf32>
    %4 = vector.broadcast %3 : vector<1x128xf32> to vector<8x128xf32>
    %5 = arith.addf %2, %4 : vector<8x128xf32>
    %c0_5 = arith.constant 0 : index
    %c0_6 = arith.constant 0 : index
    %6 = vector.load %arg4[%c0_5, %c0_6] : memref<8x128xf32, #tpu.memory_space<vmem>>, vector<8x128xf32>
    tpu.vector_store %arg4[%c0_5, %c0_6], %5 {strides = array<i32>} : memref<8x128xf32, #tpu.memory_space<vmem>>, vector<8x128xf32>,
    return
  }
  func.func @transform_0(%arg0: i32) -> (i32, i32) {
    %c0_i32 = arith.constant 0 : i32
    %c0_i32_0 = arith.constant 0 : i32
    return %arg0, %c0_i32 : i32, i32
  }
  func.func @transform_1(%arg0: i32) -> (i32, i32) {
    %c0_i32 = arith.constant 0 : i32
    %c0_i32_0 = arith.constant 0 : i32
    %c0_i32_1 = arith.constant 0 : i32
    return %c0_i32, %c0_i32_0 : i32, i32
  }
  func.func @transform_2(%arg0: i32) -> (i32, i32) {
    %c0_i32 = arith.constant 0 : i32
    %c0_i32_0 = arith.constant 0 : i32
    %c0_i32_1 = arith.constant 0 : i32
    return %c0_i32, %c0_i32_0 : i32, i32
  }
  func.func @transform_3(%arg0: i32) -> (i32, i32) {
    %c0_i32 = arith.constant 0 : i32
    %c0_i32_0 = arith.constant 0 : i32
    return %arg0, %c0_i32 : i32, i32
  }
}

</mosaic_0001>

<llo_original>
// kernel: forward.1
$region0: #{forward.1}
  #allocation0 [shape = 'u32[]', space=smem, size = 0x4, offset = 0x4, fixed_abs, tag = 'smem constant byte address 0x4 - core index']
  #allocation1 [shape = 'u32[72,128]{1,0:T(1,128)}', space=vmem, size = 0x9000, scoped, tag = 'internal scratch']
  %s0 = inlined_call_operand.vmem [shape: f32[8,128], index: 0, kind: input, shape index: {}]
  %s1 = inlined_call_operand.hbm [shape: f32[128,128], index: 1, kind: input, shape index: {}]
  %s2 = inlined_call_operand.vmem [shape: f32[1,128], index: 2, kind: input, shape index: {}]
  %s3 = inlined_call_operand.hbm [shape: f32[8,128], index: 3, kind: output, shape index: {}]
  %s4 = sld [smem:[#allocation0]]
  $region26: #{forward.1} parent=0
    _
  %s6 = ssub.s32 1, %s4
  %s7 = scalar_select 0, %s6, %s4
  $region1: #{forward.1} parent=0
    #allocation2 [shape = 'u8[65536]{0}', space=vmem, size = 0x10000, scoped, tag = 'input window, operand 1, single buffered']
    #allocation3 [shape = 's32[1]{0}', space=sflag, size = 0x4, scoped, tag = 'scoped memory for forward.1']
    #allocation4 [shape = 's32[1]{0}', space=sflag, size = 0x4, scoped, tag = 'scoped memory for forward.1']
    #allocation5 [shape = 'u8[4096]{0}', space=vmem, size = 0x1000, scoped, tag = 'output window, operand 0, single buffered']
    %8 = vsyncpa [#allocation3], 0
    %9 = vsyncpa [#allocation4], 0
    // Predicated region
    $region2: #{forward.1} parent=1 // pred_check
      _
    $region3: #{forward.1} parent=1 // pred_check_branch
      %11 = sbr.rel (0) target = $region5
    $region4: #{forward.1} parent=1 // pred_region
      _
    $region5: #{forward.1} parent=1 // pred_fallthru
      _
    // Predicated region
    $region6: #{forward.1} parent=1 // pred_check
      _
    $region7: #{forward.1} parent=1 // pred_check_branch
      %13 = sbr.rel (0) target = $region9
    $region8: #{forward.1} parent=1 // pred_region
      %15 = vsyncadd [#allocation3], 0
      %s16 = sshll.u32 %s1, 4
      %s17 = int_to_ptr.hbm [resolvable:$true] %s16
      %s18 = sshll.u32 [#allocation2], 4
      %s19 = int_to_ptr.vmem [resolvable:$true] %s18
      %24 = dma.hbm_to_vmem [thread:$0]  %s17, 2048, %s19, [#allocation3], 128, 128, 8
    $region9: #{forward.1} parent=1 // pred_fallthru
      _
    // Predicated region
    $region10: #{forward.1} parent=1 // pred_check
      _
    $region11: #{forward.1} parent=1 // pred_check_branch
      %26 = sbr.rel (0) target = $region13
    $region12: #{forward.1} parent=1 // pred_region
      _
    $region13: #{forward.1} parent=1 // pred_fallthru
      _
    // Predicated region
    $region14: #{forward.1} parent=1 // pred_check
      _
    $region15: #{forward.1} parent=1 // pred_check_branch
      %28 = sbr.rel (0) target = $region17
    $region16: #{forward.1} parent=1 // pred_region
      %30 = dma.done [#allocation3], 2048
    $region17: #{forward.1} parent=1 // pred_fallthru
      _
    %v31 = vld [vmem:[%s0] sm:$0xff]
    %v32 = vld [vmem:[#allocation2] sm:$0xff]
    %v33 = vld [vmem:[#allocation2 + $0x8] sm:$0xff]
    %v34 = vld [vmem:[#allocation2 + $0x10] sm:$0xff]
    %v35 = vld [vmem:[#allocation2 + $0x18] sm:$0xff]
    %v36 = vld [vmem:[#allocation2 + $0x20] sm:$0xff]
    %v37 = vld [vmem:[#allocation2 + $0x28] sm:$0xff]
    %v38 = vld [vmem:[#allocation2 + $0x30] sm:$0xff]
    %v39 = vld [vmem:[#allocation2 + $0x38] sm:$0xff]
    %v40 = vld [vmem:[#allocation2 + $0x40] sm:$0xff]
    %v41 = vld [vmem:[#allocation2 + $0x48] sm:$0xff]
    %v42 = vld [vmem:[#allocation2 + $0x50] sm:$0xff]
    %v43 = vld [vmem:[#allocation2 + $0x58] sm:$0xff]
    %v44 = vld [vmem:[#allocation2 + $0x60] sm:$0xff]
    %v45 = vld [vmem:[#allocation2 + $0x68] sm:$0xff]
    %v46 = vld [vmem:[#allocation2 + $0x70] sm:$0xff]
    %v47 = vld [vmem:[#allocation2 + $0x78] sm:$0xff]
    %v48 = vld [vmem:[%s2] sm:$0x1]
    %v50 = vperm.slane %v48, 0
    %52 = vmatpush.xpose.msra.mxu0 %v47
    %53 = vmatpush.xpose.msra.mxu0 %v46
    %54 = vmatpush.xpose.msra.mxu0 %v45
    %55 = vmatpush.xpose.msra.mxu0 %v44
    %56 = vmatpush.xpose.msra.mxu0 %v43
    %57 = vmatpush.xpose.msra.mxu0 %v42
    %58 = vmatpush.xpose.msra.mxu0 %v41
    %59 = vmatpush.xpose.msra.mxu0 %v40
    %60 = vmatpush.xpose.msra.mxu0 %v39
    %61 = vmatpush.xpose.msra.mxu0 %v38
    %62 = vmatpush.xpose.msra.mxu0 %v37
    %63 = vmatpush.xpose.msra.mxu0 %v36
    %64 = vmatpush.xpose.msra.mxu0 %v35
    %65 = vmatpush.xpose.msra.mxu0 %v34
    %66 = vmatpush.xpose.msra.mxu0 %v33
    %67 = vmatpush.xpose.msra.mxu0 %v32
    %68 = vmatmul.f32.gmra.mxu0 %v31
    %v69 = vpop.f32.mrf.mxu0
    %v70 = vadd.f32 %v50, %v69
    %71 = vdwg.mxu0
    %72 = vst [vmem:[#allocation5] sm:$0xff] %v70
    // Predicated region
    $region18: #{forward.1} parent=1 // pred_check
      _
    $region19: #{forward.1} parent=1 // pred_check_branch
      %74 = sbr.rel (0) target = $region21
    $region20: #{forward.1} parent=1 // pred_region
      %76 = vsyncadd [#allocation4], 0
      %s78 = sshll.u32 [#allocation5], 4
      %s79 = int_to_ptr.vmem [resolvable:$true] %s78
      %s80 = sshll.u32 %s3, 4
      %s81 = int_to_ptr.hbm [resolvable:$true] %s80
      %83 = dma.vmem_to_hbm [thread:$0]  %s79, 128, %s81, [#allocation4]
    $region21: #{forward.1} parent=1 // pred_fallthru
      _
    // Predicated region
    $region22: #{forward.1} parent=1 // pred_check
      _
    $region23: #{forward.1} parent=1 // pred_check_branch
      %85 = sbr.rel (0) target = $region25
    $region24: #{forward.1} parent=1 // pred_region
      %87 = dma.done [#allocation4], 128
    $region25: #{forward.1} parent=1 // pred_fallthru
      _
    %88 = vsyncpa [#allocation3], 1
    %89 = vsyncpa [#allocation4], 1

</llo_original>
